<compile_context>
chip_gen: v5e
topology: v5e:2x2
jax: 0.10.0
libtpu: 0.0.40
codegen_flags: <defaults>
</compile_context>

<pallas_src>
import functools

import jax
import jax.numpy as jnp
from jax.experimental import pallas as pl
from jax.experimental.pallas import tpu as pltpu


# ---------------------------------------------------------------------------
# Kernels
# ---------------------------------------------------------------------------
def _conv_down_kernel(xm_ref, xh_ref, w_ref, b_ref, o_ref, *, TH, W_out, C):
    """im2col 3x3/stride-2 conv on a space-to-depth packed, zero-padded input.

    xm_ref: (1, TH, W_out+1, 4*C)  packed rows [i*TH, i*TH+TH)
    xh_ref: (1, 1,  W_out+1, 4*C)  halo packed row i*TH+TH
    w_ref : (9*C, C)               weights, rows ordered (kh, kw, c_in)
    b_ref : (1, C)
    o_ref : (1, TH*W_out, C)
    """
    xb = jnp.concatenate([xm_ref[0], xh_ref[0]], axis=0)     # (TH+1, W_out+1, 4C)

    taps = []
    for kh in range(3):
        rh, dh = divmod(kh, 2)            # kh: 0->(0,0)  1->(0,1)  2->(1,0)
        for kw in range(3):
            rw, dw = divmod(kw, 2)        # kw: 0->(0,0)  1->(0,1)  2->(1,0)
            ch0 = (dh * 2 + dw) * C
            taps.append(xb[rh:rh + TH, rw:rw + W_out, ch0:ch0 + C])
    patch = jnp.concatenate(taps, axis=-1)                    # (TH, W_out, 9C)
    patch = patch.reshape(TH * W_out, 9 * C).astype(jnp.float32)

    acc = jnp.dot(patch, w_ref[...].astype(jnp.float32),
                  preferred_element_type=jnp.float32)         # (TH*W_out, C)
    acc = acc + b_ref[0].astype(jnp.float32)[None, :]
    o_ref[0] = acc.astype(o_ref.dtype)


def _avgpool_kernel(x_ref, o_ref, *, C):
    """2x2/stride-2 average pool on a space-to-depth packed input.

    x_ref: (1, TH, W_out, 4*C)
    o_ref: (1, TH, W_out, C)
    """
    xb = x_ref[0].astype(jnp.float32)
    s = (xb[..., 0 * C:1 * C] + xb[..., 1 * C:2 * C]
         + xb[..., 2 * C:3 * C] + xb[..., 3 * C:4 * C])
    o_ref[0] = (s * 0.25).astype(o_ref.dtype)


# ---------------------------------------------------------------------------
# Wrapper helpers (layout plumbing)
# ---------------------------------------------------------------------------
def _space_to_depth(x_nchw, hp2, wp2):
    """(N,C,H,W) -> crop/zero-pad bottom-right to (2*hp2, 2*wp2) spatial
    -> (N, hp2, wp2, 4*C) with channel order (dh, dw, c)."""
    N, C, H, W = x_nchw.shape
    Hc, Wc = min(H, 2 * hp2), min(W, 2 * wp2)
    xp = x_nchw[:, :, :Hc, :Wc]
    xp = jnp.pad(xp, ((0, 0), (0, 0), (0, 2 * hp2 - Hc), (0, 2 * wp2 - Wc)))
    xp = xp.reshape(N, C, hp2, 2, wp2, 2)
    return jnp.transpose(xp, (0, 2, 4, 3, 5, 1)).reshape(N, hp2, wp2, 4 * C)


def _pick_tile_rows(h_out, w_out, requested):
    """Largest TH <= requested dividing h_out with TH*w_out a sublane multiple."""
    th = max(1, min(requested, h_out))
    while th > 1 and (h_out % th != 0 or (th * w_out) % 8 != 0):
        th -= 1
    if h_out % th != 0 or ((th * w_out) % 8 != 0 and th != h_out):
        th = h_out
    return th


# ---------------------------------------------------------------------------
# Public entry point
# ---------------------------------------------------------------------------
def downsample(x_nchw, *, with_conv, weight=None, bias=None, tile_rows=8):
    """x_nchw: (N, C, H, W).  weight: (C, C, 3, 3) OIHW.  bias: (C,)."""
    N, C, H, W = x_nchw.shape
    dtype = x_nchw.dtype
    H_out, W_out = H // 2, W // 2

    if with_conv:
        Hp2, Wp2 = H_out + 1, W_out + 1
        # Fused pad + space-to-depth: one HBM pass; every conv tap becomes a
        # contiguous slice inside the kernel.
        x_pack = _space_to_depth(x_nchw, Hp2, Wp2)

        # OIHW -> rows ordered (kh, kw, c_in), cols = c_out  (matches tap concat).
        w9 = jnp.transpose(weight, (2, 3, 1, 0)).reshape(9 * C, C)
        b2 = bias.reshape(1, C)

        TH = _pick_tile_rows(H_out, W_out, tile_rows)
        kern = functools.partial(_conv_down_kernel, TH=TH, W_out=W_out, C=C)
        out_flat = pl.pallas_call(
            kern,
            out_shape=jax.ShapeDtypeStruct((N, H_out * W_out, C), dtype),
            grid=(N, H_out // TH),
            in_specs=[
                # main packed rows of the window
                pl.BlockSpec((1, TH, Wp2, 4 * C), lambda n, i: (n, i, 0, 0)),
                # one-row halo (block height 1 => index is an element offset)
                pl.BlockSpec((1, 1, Wp2, 4 * C),
                             lambda n, i: (n, i * TH + TH, 0, 0)),
                pl.BlockSpec((9 * C, C), lambda n, i: (0, 0)),
                pl.BlockSpec((1, C), lambda n, i: (0, 0)),
            ],
            out_specs=pl.BlockSpec((1, TH * W_out, C), lambda n, i: (n, i, 0)),
            compiler_params=pltpu.CompilerParams(
                dimension_semantics=("parallel", "parallel")),
        )(x_pack, x_pack, w9, b2)
        out_nhwc = out_flat.reshape(N, H_out, W_out, C)
    else:
        # avg_pool2d floors odd dims -> crop, then pack 2x2 into channels.
        x_pack = _space_to_depth(x_nchw, H_out, W_out)
        TH = _pick_tile_rows(H_out, W_out, tile_rows)
        kern = functools.partial(_avgpool_kernel, C=C)
        out_nhwc = pl.pallas_call(
            kern,
            out_shape=jax.ShapeDtypeStruct((N, H_out, W_out, C), dtype),
            grid=(N, H_out // TH),
            in_specs=[pl.BlockSpec((1, TH, W_out, 4 * C),
                                   lambda n, i: (n, i, 0, 0))],
            out_specs=pl.BlockSpec((1, TH, W_out, C),
                                   lambda n, i: (n, i, 0, 0)),
            compiler_params=pltpu.CompilerParams(
                dimension_semantics=("parallel", "parallel")),
        )(x_pack)

    return jnp.transpose(out_nhwc, (0, 3, 1, 2))  # -> NCHW


# ---------------------------------------------------------------------------
# Main
# ---------------------------------------------------------------------------
if __name__ == "__main__":
    key = jax.random.PRNGKey(0)
    kx, kw, kb = jax.random.split(key, 3)

    N, C, H, W = 2, 4, 16, 16
    x = jax.random.normal(kx, (N, C, H, W), dtype=jnp.float32)

    # Deterministic synthetic Conv2d(C, C, 3, stride=2) parameters (OIHW / bias).
    fan_in = C * 3 * 3
    bound = 1.0 / (fan_in ** 0.5)
    weight = jax.random.uniform(kw, (C, C, 3, 3), jnp.float32, -bound, bound)
    bias = jax.random.uniform(kb, (C,), jnp.float32, -bound, bound)

    # --- with_conv=True path (pad + conv3x3 stride2) --------------------------
    out_conv = jax.block_until_ready(
        downsample(x, with_conv=True, weight=weight, bias=bias, tile_rows=4))
    ref_conv = jax.lax.conv_general_dilated(
        x, weight, window_strides=(2, 2), padding=((0, 1), (0, 1)),
        dimension_numbers=("NCHW", "OIHW", "NCHW"),
    ) + bias[None, :, None, None]
    assert out_conv.shape == (N, C, 8, 8), out_conv.shape
    assert jnp.allclose(out_conv, ref_conv, atol=1e-5, rtol=1e-5), (
        float(jnp.max(jnp.abs(out_conv - ref_conv))))

    # --- with_conv=False path (avg_pool2d) -------------------------------------
    out_pool = jax.block_until_ready(
        downsample(x, with_conv=False, tile_rows=4))
    ref_pool = x.reshape(N, C, H // 2, 2, W // 2, 2).mean(axis=(3, 5))
    assert out_pool.shape == (N, C, 8, 8), out_pool.shape
    assert jnp.allclose(out_pool, ref_pool, atol=1e-5, rtol=1e-5), (
        float(jnp.max(jnp.abs(out_pool - ref_pool))))

    print("KERNEL_OK")
</pallas_src>

<mosaic_0001>
module attributes {stable_mosaic.version = 11 : i64} {
  func.func @_conv_down_kernel(%arg0: i32, %arg1: i32, %arg2: memref<1x4x9x16xf32, #tpu.memory_space<vmem>>, %arg3: memref<1x1x9x16xf32, #tpu.memory_space<vmem>>, %arg4: memref<36x4xf32, #tpu.memory_space<vmem>>, %arg5: memref<1x4xf32, #tpu.memory_space<vmem>>, %arg6: memref<1x32x4xf32, #tpu.memory_space<vmem>>) attributes {dimension_semantics = [#tpu.dimension_semantics<parallel>, #tpu.dimension_semantics<parallel>], iteration_bounds = array<i64: 2, 2>, scalar_prefetch = 0 : i64, scratch_operands = 0 : i64, tpu.core_type = #tpu.core_type<tc>, window_params = [{transform_indices = @transform_0, window_bounds = array<i64: 1, 4, 9, 16>}, {transform_indices = @transform_1, window_bounds = array<i64: 1, 1, 9, 16>}, {pipeline_mode = #tpu.pipeline_mode<synchronous>, transform_indices = @transform_2, window_bounds = array<i64: 36, 4>}, {pipeline_mode = #tpu.pipeline_mode<synchronous>, transform_indices = @transform_3, window_bounds = array<i64: 1, 4>}, {transform_indices = @transform_4, window_bounds = array<i64: 1, 32, 4>}]} {
    %c0 = arith.constant 0 : index
    %c0_0 = arith.constant 0 : index
    %c0_1 = arith.constant 0 : index
    %c0_2 = arith.constant 0 : index
    %0 = vector.load %arg2[%c0, %c0_0, %c0_1, %c0_2] : memref<1x4x9x16xf32, #tpu.memory_space<vmem>>, vector<1x4x9x16xf32>
    %1 = vector.shape_cast %0 : vector<1x4x9x16xf32> to vector<4x9x16xf32>
    %c0_3 = arith.constant 0 : index
    %c0_4 = arith.constant 0 : index
    %c0_5 = arith.constant 0 : index
    %c0_6 = arith.constant 0 : index
    %2 = vector.load %arg3[%c0_3, %c0_4, %c0_5, %c0_6] : memref<1x1x9x16xf32, #tpu.memory_space<vmem>>, vector<1x1x9x16xf32>
    %3 = vector.shape_cast %2 : vector<1x1x9x16xf32> to vector<1x9x16xf32>
    %4 = tpu.concatenate %1, %3 in 0 : vector<4x9x16xf32>, vector<1x9x16xf32> -> vector<5x9x16xf32>
    %5 = vector.extract_strided_slice %4 {offsets = [0, 0, 0], sizes = [4, 8, 4], strides = [1, 1, 1]} : vector<5x9x16xf32> to vector<4x8x4xf32>
    %6 = vector.extract_strided_slice %4 {offsets = [0, 0, 4], sizes = [4, 8, 4], strides = [1, 1, 1]} : vector<5x9x16xf32> to vector<4x8x4xf32>
    %7 = vector.extract_strided_slice %4 {offsets = [0, 1, 0], sizes = [4, 8, 4], strides = [1, 1, 1]} : vector<5x9x16xf32> to vector<4x8x4xf32>
    %8 = vector.extract_strided_slice %4 {offsets = [0, 0, 8], sizes = [4, 8, 4], strides = [1, 1, 1]} : vector<5x9x16xf32> to vector<4x8x4xf32>
    %9 = vector.extract_strided_slice %4 {offsets = [0, 0, 12], sizes = [4, 8, 4], strides = [1, 1, 1]} : vector<5x9x16xf32> to vector<4x8x4xf32>
    %10 = vector.extract_strided_slice %4 {offsets = [0, 1, 8], sizes = [4, 8, 4], strides = [1, 1, 1]} : vector<5x9x16xf32> to vector<4x8x4xf32>
    %11 = vector.extract_strided_slice %4 {offsets = [1, 0, 0], sizes = [4, 8, 4], strides = [1, 1, 1]} : vector<5x9x16xf32> to vector<4x8x4xf32>
    %12 = vector.extract_strided_slice %4 {offsets = [1, 0, 4], sizes = [4, 8, 4], strides = [1, 1, 1]} : vector<5x9x16xf32> to vector<4x8x4xf32>
    %13 = vector.extract_strided_slice %4 {offsets = [1, 1, 0], sizes = [4, 8, 4], strides = [1, 1, 1]} : vector<5x9x16xf32> to vector<4x8x4xf32>
    %14 = tpu.concatenate %5, %6, %7, %8, %9, %10, %11, %12, %13 in 2 : vector<4x8x4xf32>, vector<4x8x4xf32>, vector<4x8x4xf32>, vector<4x8x4xf32>, vector<4x8x4xf32>, vector<4x8x4xf32>, vector<4x8x4xf32>, vector<4x8x4xf32>, vector<4x8x4xf32> -> vector<4x8x36xf32>
    %15 = vector.shape_cast %14 : vector<4x8x36xf32> to vector<32x36xf32>
    %c0_7 = arith.constant 0 : index
    %c0_8 = arith.constant 0 : index
    %16 = vector.load %arg4[%c0_7, %c0_8] : memref<36x4xf32, #tpu.memory_space<vmem>>, vector<36x4xf32>
    %cst = arith.constant dense<0.000000e+00> : vector<32x4xf32>
    %17 = tpu.matmul %15, %16, %cst {dimension_numbers = #tpu.dot_dimension_numbers<[1], [0], [0], [1], [0, 0, 1, 1], [], []>} : vector<32x36xf32>, vector<36x4xf32>, vector<32x4xf32> -> vector<32x4xf32>
    %c0_9 = arith.constant 0 : index
    %c0_10 = arith.constant 0 : index
    %18 = vector.load %arg5[%c0_9, %c0_10] : memref<1x4xf32, #tpu.memory_space<vmem>>, vector<1x4xf32>
    %19 = vector.shape_cast %18 : vector<1x4xf32> to vector<4xf32>
    %20 = vector.shape_cast %19 : vector<4xf32> to vector<1x4xf32>
    %21 = vector.broadcast %20 : vector<1x4xf32> to vector<32x4xf32>
    %22 = arith.addf %17, %21 : vector<32x4xf32>
    %c0_11 = arith.constant 0 : index
    %c0_12 = arith.constant 0 : index
    %c0_13 = arith.constant 0 : index
    %23 = vector.load %arg6[%c0_11, %c0_12, %c0_13] : memref<1x32x4xf32, #tpu.memory_space<vmem>>, vector<1x32x4xf32>
    %24 = vector.shape_cast %23 : vector<1x32x4xf32> to vector<32x4xf32>
    %25 = vector.shape_cast %22 : vector<32x4xf32> to vector<1x32x4xf32>
    tpu.vector_store %arg6[%c0_11, %c0_12, %c0_13], %25 {strides = array<i32>} : memref<1x32x4xf32, #tpu.memory_space<vmem>>, vector<1x32x4xf32>,
    return
  }
  func.func @transform_0(%arg0: i32, %arg1: i32) -> (i32, i32, i32, i32) {
    %c0_i32 = arith.constant 0 : i32
    %c0_i32_0 = arith.constant 0 : i32
    %c0_i32_1 = arith.constant 0 : i32
    return %arg0, %arg1, %c0_i32, %c0_i32_0 : i32, i32, i32, i32
  }
  func.func @transform_1(%arg0: i32, %arg1: i32) -> (i32, i32, i32, i32) {
    %c4_i32 = arith.constant 4 : i32
    %0 = arith.muli %arg1, %c4_i32 : i32
    %c4_i32_0 = arith.constant 4 : i32
    %1 = arith.addi %0, %c4_i32_0 : i32
    %c0_i32 = arith.constant 0 : i32
    %c0_i32_1 = arith.constant 0 : i32
    %c0_i32_2 = arith.constant 0 : i32
    return %arg0, %1, %c0_i32, %c0_i32_1 : i32, i32, i32, i32
  }
  func.func @transform_2(%arg0: i32, %arg1: i32) -> (i32, i32) {
    %c0_i32 = arith.constant 0 : i32
    %c0_i32_0 = arith.constant 0 : i32
    %c0_i32_1 = arith.constant 0 : i32
    return %c0_i32, %c0_i32_0 : i32, i32
  }
  func.func @transform_3(%arg0: i32, %arg1: i32) -> (i32, i32) {
    %c0_i32 = arith.constant 0 : i32
    %c0_i32_0 = arith.constant 0 : i32
    %c0_i32_1 = arith.constant 0 : i32
    return %c0_i32, %c0_i32_0 : i32, i32
  }
  func.func @transform_4(%arg0: i32, %arg1: i32) -> (i32, i32, i32) {
    %c0_i32 = arith.constant 0 : i32
    %c0_i32_0 = arith.constant 0 : i32
    return %arg0, %arg1, %c0_i32 : i32, i32, i32
  }
}

</mosaic_0001>

<llo_original>
// kernel: tpu_custom_call.1
$region0: #{tpu_custom_call.1}
  #allocation0 [shape = 'u32[]', space=smem, size = 0x4, offset = 0x4, fixed_abs, tag = 'smem constant byte address 0x4 - core index']
  #allocation1 [shape = 'u32[72,128]{1,0:T(1,128)}', space=vmem, size = 0x9000, scoped, tag = 'internal scratch']
  %s0 = inlined_call_operand.vmem [shape: f32[2,9,9,16], index: 0, kind: input, shape index: {}]
  %s1 = inlined_call_operand.vmem [shape: f32[2,9,9,16], index: 1, kind: input, shape index: {}]
  %s2 = inlined_call_operand.vmem [shape: f32[36,4], index: 2, kind: input, shape index: {}]
  %s3 = inlined_call_operand.vmem [shape: f32[1,4], index: 3, kind: input, shape index: {}]
  %s4 = inlined_call_operand.vmem [shape: f32[2,64,4], index: 4, kind: output, shape index: {}]
  %s5 = sld [smem:[#allocation0]]
  $region49: #{tpu_custom_call.1} parent=0
    _
  %s7 = ssub.s32 1, %s5
  %s8 = scalar_select 0, %s7, %s5
  loop: start=0, step=1, limit=6
  $region2: #{tpu_custom_call.1} parent=0 // loop_pre_header
    _
  $region3: #{tpu_custom_call.1} parent=0 // loop_header
    %s10 = sphi 0, %s14
    %p11 = scmp.ge.s32.totalorder %s10, 6
    %s17 = sphi 0, %s29
    %s18 = sphi 0, %s25
    %s19 = sphi 0, %s17
    %s20 = sphi 0, %s18
    %s21 = sphi 0, %s19
    %s22 = sphi 0, %s20
    %s34 = sphi 0, %s36
    %s37 = sphi 0, %s34
    %s38 = sphi 0, %s37
    %s54 = sphi 0, %s38
    %s66 = sphi 0, %s68
    %s69 = sphi 0, %s66
    %s70 = sphi 0, %s69
    %s86 = sphi 0, %s70
    %s90 = sphi 0, %s90
    %s92 = sphi 0, %s90
    %s93 = sphi 0, %s92
    %s107 = sphi 0, %s93
    %s111 = sphi 0, %s111
    %s113 = sphi 0, %s111
    %s114 = sphi 0, %s113
    %s128 = sphi 0, %s114
    %s136 = sphi 0, %s138
    %s139 = sphi 0, %s136
    %s140 = sphi 0, %s139
    %s156 = sphi 0, %s140
  $region4: #{tpu_custom_call.1} parent=0 // loop_header_branch
    %13 = sbr.rel (%p11) target = $region8
  $region5: #{tpu_custom_call.1} parent=0 // loop_body
    %s15 = ssub.s32 %s10, 1
    %s16 = ssub.s32 %s10, 2
    %s23 = sadd.s32 1, %s18
    %p24 = scmp.ge.s32.totalorder %s23, 2
    %s25 = scalar_select %p24, 0, %s23
    %s26 = sadd.s32 1, %s17
    %s27 = scalar_select %p24, %s26, %s17
    %p28 = scmp.ge.s32.totalorder %s27, 2
    %s29 = scalar_select %p28, 0, %s27
    %s30 = ssub.s32 %s17, %s29
    %s31 = ssub.s32 %s18, %s25
    %s32 = sor.u32 %s30, %s31
    %p33 = scmp.eq.s32.totalorder %s32, 0
    %s35 = sadd.s32 %s34, 1
    %s36 = scalar_select %p33, %s34, %s35
    %p39 = pneg %p33
    %p40 = scmp.eq.s32.totalorder %s10, 3
    %p41 = por %p39, %p40
    %p42 = scmp.ne.s32.totalorder %s34, %s37
    %p43 = scmp.eq.s32.totalorder %s10, 0
    %p44 = por %p42, %p43
    %p45 = scmp.ne.s32.totalorder %s34, %s37
    %p46 = scmp.eq.s32.totalorder %s15, 3
    %p47 = por %p45, %p46
    %p48 = scmp.ne.s32.totalorder %s37, %s38
    %p49 = scmp.eq.s32.totalorder %s15, 0
    %p50 = por %p48, %p49
    %p51 = scmp.ne.s32.totalorder %s37, %s38
    %p52 = scmp.eq.s32.totalorder %s16, 3
    %p53 = por %p51, %p52
    %p55 = scmp.ne.s32.totalorder %s38, %s54
    %p56 = scmp.eq.s32.totalorder %s16, 0
    %p57 = por %p55, %p56
    %s58 = smul.u32 %s18, 4
    %s59 = sadd.s32 %s58, 4
    %s60 = smul.u32 %s25, 4
    %s61 = sadd.s32 %s60, 4
    %s62 = ssub.s32 %s17, %s29
    %s63 = ssub.s32 %s59, %s61
    %s64 = sor.u32 %s62, %s63
    %p65 = scmp.eq.s32.totalorder %s64, 0
    %s67 = sadd.s32 %s66, 1
    %s68 = scalar_select %p65, %s66, %s67
    %p71 = pneg %p65
    %p72 = scmp.eq.s32.totalorder %s10, 3
    %p73 = por %p71, %p72
    %p74 = scmp.ne.s32.totalorder %s66, %s69
    %p75 = scmp.eq.s32.totalorder %s10, 0
    %p76 = por %p74, %p75
    %p77 = scmp.ne.s32.totalorder %s66, %s69
    %p78 = scmp.eq.s32.totalorder %s15, 3
    %p79 = por %p77, %p78
    %p80 = scmp.ne.s32.totalorder %s69, %s70
    %p81 = scmp.eq.s32.totalorder %s15, 0
    %p82 = por %p80, %p81
    %p83 = scmp.ne.s32.totalorder %s69, %s70
    %p84 = scmp.eq.s32.totalorder %s16, 3
    %p85 = por %p83, %p84
    %p87 = scmp.ne.s32.totalorder %s70, %s86
    %p88 = scmp.eq.s32.totalorder %s16, 0
    %p89 = por %p87, %p88
    %s91 = sadd.s32 %s90, 1
    %p94 = scmp.eq.s32.totalorder %s10, 3
    %p95 = scmp.ne.s32.totalorder %s90, %s92
    %p96 = scmp.eq.s32.totalorder %s10, 0
    %p97 = por %p95, %p96
    %p98 = scmp.ne.s32.totalorder %s90, %s92
    %p99 = scmp.eq.s32.totalorder %s15, 3
    %p100 = por %p98, %p99
    %p101 = scmp.ne.s32.totalorder %s92, %s93
    %p102 = scmp.eq.s32.totalorder %s15, 0
    %p103 = por %p101, %p102
    %p104 = scmp.ne.s32.totalorder %s92, %s93
    %p105 = scmp.eq.s32.totalorder %s16, 3
    %p106 = por %p104, %p105
    %p108 = scmp.ne.s32.totalorder %s93, %s107
    %p109 = scmp.eq.s32.totalorder %s16, 0
    %p110 = por %p108, %p109
    %s112 = sadd.s32 %s111, 1
    %p115 = scmp.eq.s32.totalorder %s10, 3
    %p116 = scmp.ne.s32.totalorder %s111, %s113
    %p117 = scmp.eq.s32.totalorder %s10, 0
    %p118 = por %p116, %p117
    %p119 = scmp.ne.s32.totalorder %s111, %s113
    %p120 = scmp.eq.s32.totalorder %s15, 3
    %p121 = por %p119, %p120
    %p122 = scmp.ne.s32.totalorder %s113, %s114
    %p123 = scmp.eq.s32.totalorder %s15, 0
    %p124 = por %p122, %p123
    %p125 = scmp.ne.s32.totalorder %s113, %s114
    %p126 = scmp.eq.s32.totalorder %s16, 3
    %p127 = por %p125, %p126
    %p129 = scmp.ne.s32.totalorder %s114, %s128
    %p130 = scmp.eq.s32.totalorder %s16, 0
    %p131 = por %p129, %p130
    %s132 = ssub.s32 %s17, %s29
    %s133 = ssub.s32 %s18, %s25
    %s134 = sor.u32 %s132, %s133
    %p135 = scmp.eq.s32.totalorder %s134, 0
    %s137 = sadd.s32 %s136, 1
    %s138 = scalar_select %p135, %s136, %s137
    %p141 = pneg %p135
    %p142 = scmp.eq.s32.totalorder %s10, 3
    %p143 = por %p141, %p142
    %p144 = scmp.ne.s32.totalorder %s136, %s139
    %p145 = scmp.eq.s32.totalorder %s10, 0
    %p146 = por %p144, %p145
    %p147 = scmp.ne.s32.totalorder %s136, %s139
    %p148 = scmp.eq.s32.totalorder %s15, 3
    %p149 = por %p147, %p148
    %p150 = scmp.ne.s32.totalorder %s139, %s140
    %p151 = scmp.eq.s32.totalorder %s15, 0
    %p152 = por %p150, %p151
    %p153 = scmp.ne.s32.totalorder %s139, %s140
    %p154 = scmp.eq.s32.totalorder %s16, 3
    %p155 = por %p153, %p154
    %p157 = scmp.ne.s32.totalorder %s140, %s156
    %p158 = scmp.eq.s32.totalorder %s16, 0
    %p159 = por %p157, %p158
    %p160 = scmp.le.s32.totalorder 1, %s10
    %p161 = scmp.lt.s32.totalorder %s10, 5
    %p162 = pnand %p160, %p161
    %p163 = pneg %p162
    // Predicated region
    $region9: #{tpu_custom_call.1} parent=5 // pred_check
      _
    $region10: #{tpu_custom_call.1} parent=5 // pred_check_branch
      %165 = sbr.rel (%p162) target = $region12
    $region11: #{tpu_custom_call.1} parent=5 // pred_region
      %s166 = ssub.s32 %s10, 1
      // Predicated region
      $region13: #{tpu_custom_call.1} parent=11 // pred_check
        %p167 = pneg %p103
      $region14: #{tpu_custom_call.1} parent=11 // pred_check_branch
        %169 = sbr.rel (%p167) target = $region16
      $region15: #{tpu_custom_call.1} parent=11 // pred_region
        _
      $region16: #{tpu_custom_call.1} parent=11 // pred_fallthru
        _
      // Predicated region
      $region17: #{tpu_custom_call.1} parent=11 // pred_check
        %p170 = pneg %p124
      $region18: #{tpu_custom_call.1} parent=11 // pred_check_branch
        %172 = sbr.rel (%p170) target = $region20
      $region19: #{tpu_custom_call.1} parent=11 // pred_region
        _
      $region20: #{tpu_custom_call.1} parent=11 // pred_fallthru
        _
    $region12: #{tpu_custom_call.1} parent=5 // pred_fallthru
      _
    %p173 = scmp.lt.s32.totalorder %s10, 4
    // Predicated region
    $region21: #{tpu_custom_call.1} parent=5 // pred_check
      %p174 = pneg %p173
    $region22: #{tpu_custom_call.1} parent=5 // pred_check_branch
      %176 = sbr.rel (%p174) target = $region24
    $region23: #{tpu_custom_call.1} parent=5 // pred_region
      // Predicated region
      $region25: #{tpu_custom_call.1} parent=23 // pred_check
        %p177 = pneg %p44
      $region26: #{tpu_custom_call.1} parent=23 // pred_check_branch
        %179 = sbr.rel (%p177) target = $region28
      $region27: #{tpu_custom_call.1} parent=23 // pred_region
        %s180 = smul.u32 4, %s18
        %s181 = ssub.s32 9, %s180
        %p182 = scmp.lt.s32.totalorder %s181, 4
        %s183 = scalar_select %p182, %s181, 4
        %s184 = smul.u32 8, %s183
        %s185 = smul.u32 %s184, 2
        %p186 = scmp.lt.s32.totalorder %s17, 1
        %s187 = scalar_select %p186, %s17, 1
        %p188 = scmp.lt.s32.totalorder %s180, 8
        %s189 = scalar_select %p188, %s180, 8
        %s190 = smul.addr %s189, 2
        %s191 = smul.addr %s187, 18
        %s192 = sadd.s32 %s190, %s191
        %s193 = smul.addr %s192, 8
        %s194 = scalar_lea.vmem %s0, %s193
        %s195 = smul.u32 4, %s18
        %s196 = ssub.s32 9, %s195
        %p197 = scmp.lt.s32.totalorder %s196, 4
        %s198 = scalar_select %p197, %s196, 4
        %s199 = smul.u32 8, %s198
        %s200 = smul.u32 %s199, 2
      $region28: #{tpu_custom_call.1} parent=23 // pred_fallthru
        _
      // Predicated region
      $region29: #{tpu_custom_call.1} parent=23 // pred_check
        %p201 = pneg %p76
      $region30: #{tpu_custom_call.1} parent=23 // pred_check_branch
        %203 = sbr.rel (%p201) target = $region32
      $region31: #{tpu_custom_call.1} parent=23 // pred_region
        %s204 = smul.u32 %s18, 4
        %s205 = sadd.s32 %s204, 4
        %p206 = scmp.lt.s32.totalorder %s17, 1
        %s207 = scalar_select %p206, %s17, 1
        %p208 = scmp.lt.s32.totalorder %s205, 8
        %s209 = scalar_select %p208, %s205, 8
        %s210 = smul.addr %s209, 2
        %s211 = smul.addr %s207, 18
        %s212 = sadd.s32 %s210, %s211
        %s213 = smul.addr %s212, 8
        %s214 = scalar_lea.vmem %s1, %s213
        %s215 = smul.u32 %s18, 4
        %s216 = sadd.s32 %s215, 4
      $region32: #{tpu_custom_call.1} parent=23 // pred_fallthru
        _
    $region24: #{tpu_custom_call.1} parent=5 // pred_fallthru
      _
    %p217 = scmp.le.s32.totalorder 1, %s10
    %p218 = scmp.lt.s32.totalorder %s10, 5
    %p219 = pnand %p217, %p218
    %p220 = pneg %p219
    // Predicated region
    $region33: #{tpu_custom_call.1} parent=5 // pred_check
      _
    $region34: #{tpu_custom_call.1} parent=5 // pred_check_branch
      %222 = sbr.rel (%p219) target = $region36
    $region35: #{tpu_custom_call.1} parent=5 // pred_region
      %s223 = ssub.s32 %s10, 1
      %s224 = smul.u32 4, %s20
      %s225 = ssub.s32 9, %s224
      %p226 = scmp.lt.s32.totalorder %s225, 4
      %s227 = scalar_select %p226, %s225, 4
      %s228 = smul.u32 8, %s227
      %s229 = smul.u32 %s228, 2
      %p230 = scmp.lt.s32.totalorder %s19, 1
      %s231 = scalar_select %p230, %s19, 1
      %p232 = scmp.lt.s32.totalorder %s224, 8
      %s233 = scalar_select %p232, %s224, 8
      %s234 = smul.addr %s233, 2
      %s235 = smul.addr %s231, 18
      %s236 = sadd.s32 %s234, %s235
      %s237 = smul.addr %s236, 8
      %s238 = scalar_lea.vmem %s0, %s237
      %p239 = pneg %p50
      %p240 = pneg %p47
      %s241 = smul.u32 %s20, 4
      %s242 = sadd.s32 %s241, 4
      %p243 = scmp.lt.s32.totalorder %s19, 1
      %s244 = scalar_select %p243, %s19, 1
      %p245 = scmp.lt.s32.totalorder %s242, 8
      %s246 = scalar_select %p245, %s242, 8
      %s247 = smul.addr %s246, 2
      %s248 = smul.addr %s244, 18
      %s249 = sadd.s32 %s247, %s248
      %s250 = smul.addr %s249, 8
      %s251 = scalar_lea.vmem %s1, %s250
      %p252 = pneg %p82
      %p253 = pneg %p79
      %p254 = pneg %p103
      %p255 = pneg %p100
      %p256 = pneg %p124
      %p257 = pneg %p121
      %p258 = pneg %p152
      %p259 = pneg %p149
      %s260 = smul.u32 4, %s20
      %p261 = scmp.lt.s32.totalorder %s19, 1
      %s262 = scalar_select %p261, %s19, 1
      %p263 = scmp.lt.s32.totalorder %s260, 7
      %s264 = scalar_select %p263, %s260, 7
      %s265 = smul.addr %s262, 8
      %s266 = sadd.s32 %s264, %s265
      %s267 = smul.addr %s266, 8
      %s268 = scalar_lea.vmem %s4, %s267
      %s269 = smul.u32 4, %s20
      %s270 = ssub.s32 9, %s269
      %p271 = scmp.lt.s32.totalorder %s270, 4
      %s272 = scalar_select %p271, %s270, 4
      %s273 = smul.u32 8, %s272
      %s274 = smul.u32 %s273, 2
      %p275 = scmp.lt.s32.totalorder %s19, 1
      %s276 = scalar_select %p275, %s19, 1
      %p277 = scmp.lt.s32.totalorder %s269, 8
      %s278 = scalar_select %p277, %s269, 8
      %s279 = smul.addr %s278, 2
      %s280 = smul.addr %s276, 18
      %s281 = sadd.s32 %s279, %s280
      %s282 = smul.addr %s281, 8
      %s283 = scalar_lea.vmem %s0, %s282
      %s284 = smul.u32 4, %s20
      %s285 = ssub.s32 9, %s284
      %p286 = scmp.lt.s32.totalorder %s285, 4
      %s287 = scalar_select %p286, %s285, 4
      %s288 = smul.u32 8, %s287
      %s289 = smul.u32 %s288, 2
      %s290 = smul.u32 %s20, 4
      %s291 = sadd.s32 %s290, 4
      %p292 = scmp.lt.s32.totalorder %s19, 1
      %s293 = scalar_select %p292, %s19, 1
      %p294 = scmp.lt.s32.totalorder %s291, 8
      %s295 = scalar_select %p294, %s291, 8
      %s296 = smul.addr %s295, 2
      %s297 = smul.addr %s293, 18
      %s298 = sadd.s32 %s296, %s297
      %s299 = smul.addr %s298, 8
      %s300 = scalar_lea.vmem %s1, %s299
      %s301 = smul.u32 %s20, 4
      %s302 = sadd.s32 %s301, 4
      %s303 = smul.u32 4, %s20
      %p304 = scmp.lt.s32.totalorder %s19, 1
      %s305 = scalar_select %p304, %s19, 1
      %p306 = scmp.lt.s32.totalorder %s303, 7
      %s307 = scalar_select %p306, %s303, 7
      %s308 = smul.addr %s305, 8
      %s309 = sadd.s32 %s307, %s308
      %s310 = smul.addr %s309, 8
      %s311 = scalar_lea.vmem %s4, %s310
      %s312 = smul.u32 4, %s20
      %v313 = vld [vmem:[%s283] sm:$0xff]
      %v314 = vld [vmem:[%s283 + $0x8] sm:$0x1]
      %v315 = vld [vmem:[%s283 + $0x10] sm:$0xff]
      %v316 = vld [vmem:[%s283 + $0x18] sm:$0x1]
      %v317 = vld [vmem:[%s283 + $0x20] sm:$0xff]
      %v318 = vld [vmem:[%s283 + $0x28] sm:$0x1]
      %v319 = vld [vmem:[%s283 + $0x30] sm:$0xff]
      %v320 = vld [vmem:[%s283 + $0x38] sm:$0x1]
      %v321 = vld [vmem:[%s300] sm:$0xff]
      %v322 = vld [vmem:[%s300 + $0x8] sm:$0x1]
      %vm331 = vcmask 1046528
      %v332 = vrot.slane %v313, 1
      %v333 = vrot.slane %v314, 1
      %v334 = vsel %vm331, %v332, %v333
      %v335 = vrot.slane %v315, 1
      %v336 = vrot.slane %v316, 1
      %v337 = vsel %vm331, %v335, %v336
      %v338 = vrot.slane %v317, 1
      %v339 = vrot.slane %v318, 1
      %v340 = vsel %vm331, %v338, %v339
      %v341 = vrot.slane %v319, 1
      %v342 = vrot.slane %v320, 1
      %v343 = vsel %vm331, %v341, %v342
      %344 = vrot.lane.b32.xlu0 %v334, 8
      %v345 = vpop.permute.xlu0 %344
      %346 = vrot.lane.b32.xlu0 %v337, 8
      %v347 = vpop.permute.xlu0 %346
      %348 = vrot.lane.b32.xlu0 %v340, 8
      %v349 = vpop.permute.xlu0 %348
      %350 = vrot.lane.b32.xlu0 %v343, 8
      %v351 = vpop.permute.xlu0 %350
      %356 = vrot.lane.b32.xlu0 %v313, 4
      %v357 = vpop.permute.xlu0 %356
      %358 = vrot.lane.b32.xlu0 %v315, 4
      %v359 = vpop.permute.xlu0 %358
      %360 = vrot.lane.b32.xlu0 %v317, 4
      %v361 = vpop.permute.xlu0 %360
      %362 = vrot.lane.b32.xlu0 %v319, 4
      %v363 = vpop.permute.xlu0 %362
      %368 = vrot.lane.b32.xlu0 %v334, 12
      %v369 = vpop.permute.xlu0 %368
      %370 = vrot.lane.b32.xlu0 %v337, 12
      %v371 = vpop.permute.xlu0 %370
      %372 = vrot.lane.b32.xlu0 %v340, 12
      %v373 = vpop.permute.xlu0 %372
      %374 = vrot.lane.b32.xlu0 %v343, 12
      %v375 = vpop.permute.xlu0 %374
      %381 = vrot.lane.b32.xlu0 %v315, 24
      %v382 = vpop.permute.xlu0 %381
      %383 = vrot.lane.b32.xlu0 %v317, 24
      %v384 = vpop.permute.xlu0 %383
      %385 = vrot.lane.b32.xlu0 %v319, 24
      %v386 = vpop.permute.xlu0 %385
      %387 = vrot.lane.b32.xlu0 %v321, 24
      %v388 = vpop.permute.xlu0 %387
      %v394 = vrot.slane %v321, 1
      %v395 = vrot.slane %v322, 1
      %v396 = vsel %vm331, %v394, %v395
      %397 = vrot.lane.b32.xlu0 %v337, 32
      %v398 = vpop.permute.xlu0 %397
      %399 = vrot.lane.b32.xlu0 %v340, 32
      %v400 = vpop.permute.xlu0 %399
      %401 = vrot.lane.b32.xlu0 %v343, 32
      %v402 = vpop.permute.xlu0 %401
      %403 = vrot.lane.b32.xlu0 %v396, 32
      %v404 = vpop.permute.xlu0 %403
      %vm409 = vcmask 64512
      %v410 = vsel %vm409, %v313, %v345
      %v411 = vsel %vm409, %v315, %v347
      %v412 = vsel %vm409, %v317, %v349
      %v413 = vsel %vm409, %v319, %v351
      %vm414 = vcmask 97280
      %v415 = vsel %vm414, %v410, %v357
      %v416 = vsel %vm414, %v411, %v359
      %v417 = vsel %vm414, %v412, %v361
      %v418 = vsel %vm414, %v413, %v363
      %vm419 = vcmask 130048
      %v420 = vsel %vm419, %v415, %v357
      %v421 = vsel %vm419, %v416, %v359
      %v422 = vsel %vm419, %v417, %v361
      %v423 = vsel %vm419, %v418, %v363
      %vm424 = vcmask 162816
      %v425 = vsel %vm424, %v420, %v369
      %v426 = vsel %vm424, %v421, %v371
      %v427 = vsel %vm424, %v422, %v373
      %v428 = vsel %vm424, %v423, %v375
      %vm429 = vcmask 195584
      %v430 = vsel %vm429, %v425, %v382
      %v431 = vsel %vm429, %v426, %v384
      %v432 = vsel %vm429, %v427, %v386
      %v433 = vsel %vm429, %v428, %v388
      %vm434 = vcmask 228352
      %v435 = vsel %vm434, %v430, %v382
      %v436 = vsel %vm434, %v431, %v384
      %v437 = vsel %vm434, %v432, %v386
      %v438 = vsel %vm434, %v433, %v388
      %vm439 = vcmask 261120
      %v440 = vsel %vm439, %v435, %v398
      %v441 = vsel %vm439, %v436, %v400
      %v442 = vsel %vm439, %v437, %v402
      %v443 = vsel %vm439, %v438, %v404
      %v444 = vld [vmem:[%s2] sm:$0xff]
      %v445 = vld [vmem:[%s2 + $0x8] sm:$0xff]
      %v446 = vld [vmem:[%s2 + $0x10] sm:$0xff]
      %v447 = vld [vmem:[%s2 + $0x18] sm:$0xff]
      %v448 = vld [vmem:[%s2 + $0x20] sm:$0xf]
      %v449 = vld [vmem:[%s3] sm:$0x1]
      %v451 = vperm.slane %v449, 0
      %vm453 = vcmask 293888
      %v455 = vsel %vm453, %v440, 0
      %v458 = vsel %vm453, %v441, 0
      %v461 = vsel %vm453, %v442, 0
      %v464 = vsel %vm453, %v443, 0
      %vm466 = vcmask 1043456
      %v468 = vsel %vm466, %v448, 0
      %470 = vmatpush.msra.mxu0 0.0
      %471 = vmatpush.msra.mxu0 0.0
      %472 = vmatpush.msra.mxu0 0.0
      %473 = vmatpush.msra.mxu0 0.0
      %474 = vmatpush.msra.mxu0 0.0
      %475 = vmatpush.msra.mxu0 0.0
      %476 = vmatpush.msra.mxu0 0.0
      %477 = vmatpush.msra.mxu0 0.0
      %478 = vmatpush.msra.mxu0 0.0
      %479 = vmatpush.msra.mxu0 0.0
      %480 = vmatpush.msra.mxu0 0.0
      %481 = vmatpush.msra.mxu0 %v468
      %482 = vmatpush.msra.mxu0 %v447
      %483 = vmatpush.msra.mxu0 %v446
      %484 = vmatpush.msra.mxu0 %v445
      %485 = vmatpush.msra.mxu0 %v444
      %486 = vmatmul.f32.gmra.mxu0 %v455
      %v487 = vpop.f32.mrf.mxu0
      %v488 = vadd.f32 %v451, %v487
      %489 = vmatmul.f32.gmra.mxu0 %v458
      %v490 = vpop.f32.mrf.mxu0
      %v491 = vadd.f32 %v451, %v490
      %492 = vmatmul.f32.gmra.mxu0 %v461
      %v493 = vpop.f32.mrf.mxu0
      %v494 = vadd.f32 %v451, %v493
      %495 = vmatmul.f32.gmra.mxu0 %v464
      %v496 = vpop.f32.mrf.mxu0
      %v497 = vadd.f32 %v451, %v496
      %498 = vdwg.mxu0
      %vm499 = vcmask 31744
      %500 = vst.msk [vmem:[%s311] sm:$0xff] %vm499, %v488
      %501 = vst.msk [vmem:[%s311 + $0x8] sm:$0xff] %vm499, %v491
      %502 = vst.msk [vmem:[%s311 + $0x10] sm:$0xff] %vm499, %v494
      %503 = vst.msk [vmem:[%s311 + $0x18] sm:$0xff] %vm499, %v497
      %s504 = smul.u32 4, %s20
      %p505 = scmp.lt.s32.totalorder %s19, 1
      %s506 = scalar_select %p505, %s19, 1
      %p507 = scmp.lt.s32.totalorder %s504, 7
      %s508 = scalar_select %p507, %s504, 7
      %s509 = smul.addr %s506, 8
      %s510 = sadd.s32 %s508, %s509
      %s511 = smul.addr %s510, 8
      %s512 = scalar_lea.vmem %s4, %s511
      // Predicated region
      $region37: #{tpu_custom_call.1} parent=35 // pred_check
        %p513 = pneg %p149
      $region38: #{tpu_custom_call.1} parent=35 // pred_check_branch
        %515 = sbr.rel (%p513) target = $region40
      $region39: #{tpu_custom_call.1} parent=35 // pred_region
        %s516 = smul.u32 4, %s20
      $region40: #{tpu_custom_call.1} parent=35 // pred_fallthru
        _
    $region36: #{tpu_custom_call.1} parent=5 // pred_fallthru
      _
    %p517 = scmp.le.s32.totalorder 2, %s10
    // Predicated region
    $region41: #{tpu_custom_call.1} parent=5 // pred_check
      %p518 = pneg %p517
    $region42: #{tpu_custom_call.1} parent=5 // pred_check_branch
      %520 = sbr.rel (%p518) target = $region44
    $region43: #{tpu_custom_call.1} parent=5 // pred_region
      %s521 = ssub.s32 %s10, 2
      // Predicated region
      $region45: #{tpu_custom_call.1} parent=43 // pred_check
        %p522 = pneg %p155
      $region46: #{tpu_custom_call.1} parent=43 // pred_check_branch
        %524 = sbr.rel (%p522) target = $region48
      $region47: #{tpu_custom_call.1} parent=43 // pred_region
        %s525 = smul.u32 4, %s22
        %p526 = scmp.lt.s32.totalorder %s21, 1
        %s527 = scalar_select %p526, %s21, 1
        %p528 = scmp.lt.s32.totalorder %s525, 7
        %s529 = scalar_select %p528, %s525, 7
        %s530 = smul.addr %s527, 8
        %s531 = sadd.s32 %s529, %s530
        %s532 = smul.addr %s531, 8
        %s533 = scalar_lea.vmem %s4, %s532
      $region48: #{tpu_custom_call.1} parent=43 // pred_fallthru
        _
    $region44: #{tpu_custom_call.1} parent=5 // pred_fallthru
      _
  $region6: #{tpu_custom_call.1} parent=0 // loop_footer
    %s14 = sadd.s32 1, %s10
  $region7: #{tpu_custom_call.1} parent=0 // loop_footer_branch
    %9 = sbr.rel target = $region3
  $region8: #{tpu_custom_call.1} parent=0 // loop_exit
    _

</llo_original>
